<compile_context>
chip_gen: v7x
topology: tpu7x:2x2x1
jax: 0.10.0
libtpu: 0.0.40
codegen_flags: <defaults>
</compile_context>

<pallas_src>
import math

import jax
import jax.numpy as jnp
from jax.experimental import pallas as pl
from jax.experimental.pallas import tpu as pltpu


def _round_up(a, b):
    return (a + b - 1) // b * b


def _embedding_head_kernel(x_ref, w_ref, b_ref, g_ref, gt_ref, o_ref):
    # x_ref : (tm, D)   bf16     w_ref : (D, tn)   bf16
    # b_ref : (1, tn)   f32      g_ref : (tn, Gn)  bf16   (0/1 block-diagonal)
    # gt_ref: (Gn, tn)  f32      o_ref : (tm, tn)  out_dtype
    y = jnp.dot(x_ref[...], w_ref[...], preferred_element_type=jnp.float32)
    y = jax.nn.sigmoid(y + b_ref[...])                        # f32, EUP exp

    # Per-group sum of squares on the MXU with bf16 operands: G is exactly
    # representable 0/1, and bf16*bf16 products are exact in the f32 accumulator.
    sq = jnp.dot((y * y).astype(jnp.bfloat16), g_ref[...],
                 preferred_element_type=jnp.float32)
    # 1 / clamp(||.||_2, 1e-12) == rsqrt(clamp(||.||^2, 1e-24))   (EUP rsqrt)
    inv = jax.lax.rsqrt(jnp.maximum(sq, 1e-24))
    # Broadcast each group's inverse norm back across its E lanes via G^T.
    # Kept in f32: bf16 on `inv` would add ~0.4% relative error to the output.
    scale = jnp.dot(inv, gt_ref[...], preferred_element_type=jnp.float32)

    o_ref[...] = (y * scale).astype(o_ref.dtype)


def prepare_embedding_head_params(weight, bias, *, freq_bins, embed_dim,
                                  tn_target=512):
    """One-time parameter preprocessing, hoisted out of the per-call forward:
    transpose to (D, FE), pad the lane axis, cast to bf16, and build the
    block-diagonal group matrices for one column tile."""
    E = int(embed_dim)
    FE = int(freq_bins) * E
    FEo, D = weight.shape
    assert FEo == FE and bias.shape == (FE,)

    # Column tile: lane-dense (multiple of 128) and group-aligned (multiple of
    # E) so embedding groups never straddle a column tile or the padding.
    lane_group = 128 * E // math.gcd(128, E)                  # lcm(128, E)
    tn = _round_up(min(max(tn_target, lane_group), _round_up(FE, lane_group)),
                   lane_group)
    FEp = _round_up(FE, tn)
    # Real groups must never share a tile / padding with padded lanes.
    assert FE % E == 0 and FEp % E == 0 and tn % E == 0 and FEp % tn == 0
    Gn = tn // E

    wT = jnp.asarray(weight, jnp.float32).T.astype(jnp.bfloat16)   # (D, FE)
    if FEp != FE:
        wT = jnp.pad(wT, ((0, 0), (0, FEp - FE)))
    b2 = jnp.asarray(bias, jnp.float32).reshape(1, FE)
    if FEp != FE:
        b2 = jnp.pad(b2, ((0, 0), (0, FEp - FE)))

    # The group pattern repeats identically in every column tile, so a single
    # (tn, Gn) block serves all tiles:  G[l, g] = 1  iff  l // E == g.
    lane_group_id = jnp.arange(tn) // E
    G = lane_group_id[:, None] == jnp.arange(Gn)[None, :]
    G_bf16 = G.astype(jnp.bfloat16)       # exact 0/1
    GT_f32 = G.T.astype(jnp.float32)      # f32 for the inverse-norm broadcast

    return dict(wT=wT, bias=b2, G=G_bf16, GT=GT_f32,
                D=int(D), FE=FE, FEp=FEp, tn=tn, Gn=Gn,
                freq_bins=int(freq_bins), embed_dim=E)


def embedding_head_forward(x, params, *, tm_target=None,
                           out_dtype=jnp.bfloat16):
    """x: (B, T, D) -> (B, T*freq_bins, embed_dim), matching EmbeddingHead."""
    B, T, D = x.shape
    assert D == params["D"]
    FE, FEp, tn, Gn = params["FE"], params["FEp"], params["tn"], params["Gn"]
    E = params["embed_dim"]
    M = B * T

    # Per-generation knobs: scoped-VMEM ceiling and default row-tile target.
    try:
        vmem_cap = int(pltpu.get_tpu_info().vmem_capacity_bytes)
    except Exception:                                      # conservative (v7x)
        vmem_cap = 64 * 1024 * 1024
    if tm_target is None:
        tm_target = 512 if vmem_cap >= (100 << 20) else 256

    # Balanced row tiles (minimal padding), 16-row aligned (bf16 packing), and
    # at least two row-grid steps when M allows so the "parallel" axis can
    # shard across v7x's two TensorCores.
    row_align = 16
    n_row_tiles = max(pl.cdiv(M, tm_target), 1)
    if n_row_tiles < 2 and M >= 2 * row_align:
        n_row_tiles = 2
    tm = _round_up(pl.cdiv(M, n_row_tiles), row_align)
    Mp = _round_up(M, tm)
    grid_m = Mp // tm
    grid_n = FEp // tn

    x2 = x.reshape(M, D).astype(jnp.bfloat16)
    if Mp != M:
        x2 = jnp.pad(x2, ((0, Mp - M), (0, 0)))

    out_isize = jnp.dtype(out_dtype).itemsize
    est = (2 * tm * D * 2              # x tiles (bf16, double-buffered)
           + 2 * D * tn * 2            # weight column tiles (bf16)
           + 2 * tn * 4                # bias tiles (f32)
           + 2 * tn * Gn * 2           # G (bf16)
           + 2 * Gn * tn * 4           # G^T (f32)
           + 2 * tm * tn * out_isize   # output tiles
           + 4 * tm * tn * 4)          # headroom: f32 intermediates / spills
    vmem_limit = int(min(max(est, 32 << 20), int(0.8 * vmem_cap)))

    cost = pl.CostEstimate(
        flops=int(2 * Mp * D * FEp + 4 * Mp * FEp * Gn),
        transcendentals=int(2 * Mp * FEp),
        bytes_accessed=int(Mp * D * 2 + grid_m * D * FEp * 2
                           + Mp * FEp * out_isize),
    )

    out = pl.pallas_call(
        _embedding_head_kernel,
        out_shape=jax.ShapeDtypeStruct((Mp, FEp), out_dtype),
        grid_spec=pltpu.PrefetchScalarGridSpec(
            num_scalar_prefetch=0,
            grid=(grid_m, grid_n),
            in_specs=[
                pl.BlockSpec((tm, D), lambda i, j: (i, 0)),     # x row tile
                pl.BlockSpec((D, tn), lambda i, j: (0, j)),     # weight cols
                pl.BlockSpec((1, tn), lambda i, j: (0, j)),     # bias cols
                pl.BlockSpec((tn, Gn), lambda i, j: (0, 0)),    # group sum G
                pl.BlockSpec((Gn, tn), lambda i, j: (0, 0)),    # broadcast G^T
            ],
            out_specs=pl.BlockSpec((tm, tn), lambda i, j: (i, j)),
        ),
        compiler_params=pltpu.CompilerParams(
            dimension_semantics=("parallel", "parallel"),
            vmem_limit_bytes=vmem_limit,
        ),
        cost_estimate=cost,
    )(x2, params["wT"], params["bias"], params["G"], params["GT"])

    out = out[:M, :FE]
    return out.reshape(B, T * params["freq_bins"], E)


def _reference(x, weight, bias, embed_dim):
    # Operand-matched reference mirroring the kernel's precision choices:
    # bf16 matmul operands / f32 accumulation, f32 sigmoid, bf16-rounded
    # squared terms summed in f32, f32 rsqrt normalization.
    B = x.shape[0]
    y = jnp.einsum("btd,fd->btf",
                   x.astype(jnp.bfloat16), weight.astype(jnp.bfloat16),
                   preferred_element_type=jnp.float32)
    y = jax.nn.sigmoid(y + bias.astype(jnp.float32))
    y = y.reshape(B, -1, embed_dim)
    sq = jnp.sum((y * y).astype(jnp.bfloat16).astype(jnp.float32),
                 axis=-1, keepdims=True)
    return y * jax.lax.rsqrt(jnp.maximum(sq, 1e-24))


if __name__ == "__main__":
    # Small shapes consistent with the module.
    B, T = 2, 16
    input_dim = 32
    freq_bins = 16
    embed_dim = 8
    FE = freq_bins * embed_dim

    key = jax.random.PRNGKey(0)
    kx, kw, kb = jax.random.split(key, 3)

    x = jax.random.normal(kx, (B, T, input_dim), dtype=jnp.float32)

    # Deterministic PyTorch-Linear-style init: U(-1/sqrt(in), 1/sqrt(in)).
    bound = 1.0 / (input_dim ** 0.5)
    weight = jax.random.uniform(kw, (FE, input_dim), jnp.float32, -bound, bound)
    bias = jax.random.uniform(kb, (FE,), jnp.float32, -bound, bound)

    params = prepare_embedding_head_params(
        weight, bias, freq_bins=freq_bins, embed_dim=embed_dim)
    out = embedding_head_forward(x, params)            # bf16 output by default
    out = jax.block_until_ready(out)

    assert out.shape == (B, T * freq_bins, embed_dim)
    out_f32 = out.astype(jnp.float32)
    ref = _reference(x, weight, bias, embed_dim)

    # Structural check: unit-norm embeddings (bf16 store quantization only).
    row_norm = jnp.linalg.norm(out_f32, axis=-1)
    assert jnp.allclose(row_norm, 1.0, atol=1e-2)
    # Numerical check vs the operand-matched reference (bf16 store rounding
    # bounds the per-element error at ~2^-9 for values in [0, 1]).
    assert jnp.allclose(out_f32, ref, atol=4e-3, rtol=4e-3)

    print("KERNEL_OK")
</pallas_src>

<mosaic_0001>
module attributes {stable_mosaic.version = 11 : i64} {
  func.func @_embedding_head_kernel(%arg0: i32, %arg1: i32, %arg2: memref<16x32xbf16, #tpu.memory_space<vmem>>, %arg3: memref<32x128xbf16, #tpu.memory_space<vmem>>, %arg4: memref<1x128xf32, #tpu.memory_space<vmem>>, %arg5: memref<128x16xbf16, #tpu.memory_space<vmem>>, %arg6: memref<16x128xf32, #tpu.memory_space<vmem>>, %arg7: memref<16x128xbf16, #tpu.memory_space<vmem>>) attributes {dimension_semantics = [#tpu.dimension_semantics<parallel>, #tpu.dimension_semantics<parallel>], iteration_bounds = array<i64: 2, 1>, scalar_prefetch = 0 : i64, scratch_operands = 0 : i64, tpu.core_type = #tpu.core_type<tc>, window_params = [{transform_indices = @transform_0, window_bounds = array<i64: 16, 32>}, {transform_indices = @transform_1, window_bounds = array<i64: 32, 128>}, {transform_indices = @transform_2, window_bounds = array<i64: 1, 128>}, {pipeline_mode = #tpu.pipeline_mode<synchronous>, transform_indices = @transform_3, window_bounds = array<i64: 128, 16>}, {pipeline_mode = #tpu.pipeline_mode<synchronous>, transform_indices = @transform_4, window_bounds = array<i64: 16, 128>}, {transform_indices = @transform_5, window_bounds = array<i64: 16, 128>}]} {
    %c0 = arith.constant 0 : index
    %c0_0 = arith.constant 0 : index
    %0 = vector.load %arg2[%c0, %c0_0] : memref<16x32xbf16, #tpu.memory_space<vmem>>, vector<16x32xbf16>
    %c0_1 = arith.constant 0 : index
    %c0_2 = arith.constant 0 : index
    %1 = vector.load %arg3[%c0_1, %c0_2] : memref<32x128xbf16, #tpu.memory_space<vmem>>, vector<32x128xbf16>
    %cst = arith.constant dense<0.000000e+00> : vector<16x128xf32>
    %2 = tpu.matmul %0, %1, %cst {dimension_numbers = #tpu.dot_dimension_numbers<[1], [0], [0], [1], [0, 0, 1, 1], [], []>} : vector<16x32xbf16>, vector<32x128xbf16>, vector<16x128xf32> -> vector<16x128xf32>
    %c0_3 = arith.constant 0 : index
    %c0_4 = arith.constant 0 : index
    %3 = vector.load %arg4[%c0_3, %c0_4] : memref<1x128xf32, #tpu.memory_space<vmem>>, vector<1x128xf32>
    %4 = vector.broadcast %3 : vector<1x128xf32> to vector<16x128xf32>
    %5 = arith.addf %2, %4 : vector<16x128xf32>
    %6 = arith.negf %5 : vector<16x128xf32>
    %7 = math.exp %6 : vector<16x128xf32>
    %cst_5 = arith.constant 1.000000e+00 : f32
    %8 = vector.broadcast %cst_5 : f32 to vector<16x128xf32>
    %9 = arith.addf %8, %7 : vector<16x128xf32>
    %10 = arith.divf %8, %9 : vector<16x128xf32>
    %11 = arith.mulf %10, %10 : vector<16x128xf32>
    %12 = arith.truncf %11 : vector<16x128xf32> to vector<16x128xbf16>
    %c0_6 = arith.constant 0 : index
    %c0_7 = arith.constant 0 : index
    %13 = vector.load %arg5[%c0_6, %c0_7] : memref<128x16xbf16, #tpu.memory_space<vmem>>, vector<128x16xbf16>
    %cst_8 = arith.constant dense<0.000000e+00> : vector<16x16xf32>
    %14 = tpu.matmul %12, %13, %cst_8 {dimension_numbers = #tpu.dot_dimension_numbers<[1], [0], [0], [1], [0, 0, 1, 1], [], []>} : vector<16x128xbf16>, vector<128x16xbf16>, vector<16x16xf32> -> vector<16x16xf32>
    %cst_9 = arith.constant 1.000000e-24 : f32
    %15 = vector.broadcast %cst_9 : f32 to vector<16x16xf32>
    %16 = arith.maximumf %14, %15 : vector<16x16xf32>
    %17 = math.rsqrt %16 : vector<16x16xf32>
    %c0_10 = arith.constant 0 : index
    %c0_11 = arith.constant 0 : index
    %18 = vector.load %arg6[%c0_10, %c0_11] : memref<16x128xf32, #tpu.memory_space<vmem>>, vector<16x128xf32>
    %cst_12 = arith.constant dense<0.000000e+00> : vector<16x128xf32>
    %19 = tpu.matmul %17, %18, %cst_12 {dimension_numbers = #tpu.dot_dimension_numbers<[1], [0], [0], [1], [0, 0, 1, 1], [], []>} : vector<16x16xf32>, vector<16x128xf32>, vector<16x128xf32> -> vector<16x128xf32>
    %20 = arith.mulf %10, %19 : vector<16x128xf32>
    %21 = arith.truncf %20 : vector<16x128xf32> to vector<16x128xbf16>
    %c0_13 = arith.constant 0 : index
    %c0_14 = arith.constant 0 : index
    %22 = vector.load %arg7[%c0_13, %c0_14] : memref<16x128xbf16, #tpu.memory_space<vmem>>, vector<16x128xbf16>
    tpu.vector_store %arg7[%c0_13, %c0_14], %21 {strides = array<i32>} : memref<16x128xbf16, #tpu.memory_space<vmem>>, vector<16x128xbf16>,
    return
  }
  func.func @transform_0(%arg0: i32, %arg1: i32) -> (i32, i32) {
    %c0_i32 = arith.constant 0 : i32
    %c0_i32_0 = arith.constant 0 : i32
    return %arg0, %c0_i32 : i32, i32
  }
  func.func @transform_1(%arg0: i32, %arg1: i32) -> (i32, i32) {
    %c0_i32 = arith.constant 0 : i32
    %c0_i32_0 = arith.constant 0 : i32
    return %c0_i32, %arg1 : i32, i32
  }
  func.func @transform_2(%arg0: i32, %arg1: i32) -> (i32, i32) {
    %c0_i32 = arith.constant 0 : i32
    %c0_i32_0 = arith.constant 0 : i32
    return %c0_i32, %arg1 : i32, i32
  }
  func.func @transform_3(%arg0: i32, %arg1: i32) -> (i32, i32) {
    %c0_i32 = arith.constant 0 : i32
    %c0_i32_0 = arith.constant 0 : i32
    %c0_i32_1 = arith.constant 0 : i32
    return %c0_i32, %c0_i32_0 : i32, i32
  }
  func.func @transform_4(%arg0: i32, %arg1: i32) -> (i32, i32) {
    %c0_i32 = arith.constant 0 : i32
    %c0_i32_0 = arith.constant 0 : i32
    %c0_i32_1 = arith.constant 0 : i32
    return %c0_i32, %c0_i32_0 : i32, i32
  }
  func.func @transform_5(%arg0: i32, %arg1: i32) -> (i32, i32) {
    %c0_i32 = arith.constant 0 : i32
    return %arg0, %arg1 : i32, i32
  }
}

</mosaic_0001>

<llo_original>
// kernel: tpu_custom_call.1
$region0: #{tpu_custom_call.1}
  #allocation0 [shape = 'u32[]', space=smem, size = 0x4, offset = 0x4, fixed_abs, tag = 'smem constant byte address 0x4 - core index']
  #allocation1 [shape = 'u32[144,128]{1,0:T(1,128)}', space=vmem, size = 0x12000, scoped, tag = 'internal scratch']
  %s0 = inlined_call_operand.vmem [shape: bf16[32,32], index: 0, kind: input, shape index: {}]
  %s1 = inlined_call_operand.vmem [shape: bf16[32,128], index: 1, kind: input, shape index: {}]
  %s2 = inlined_call_operand.vmem [shape: f32[1,128], index: 2, kind: input, shape index: {}]
  %s3 = inlined_call_operand.vmem [shape: bf16[128,16], index: 3, kind: input, shape index: {}]
  %s4 = inlined_call_operand.vmem [shape: f32[16,128], index: 4, kind: input, shape index: {}]
  %s5 = inlined_call_operand.hbm [shape: bf16[32,128], index: 5, kind: output, shape index: {}]
  %s6 = sld [smem:[#allocation0]]
  $region53: #{tpu_custom_call.1} parent=0
    _
  %s8 = ssub.s32 1, %s6
  %s9 = scalar_select 0, %s8, %s6
  $region1: #{tpu_custom_call.1} parent=0
    #allocation2 [shape = 'u8[8192]{0}', space=vmem, size = 0x2000, scoped, tag = 'output window, operand 0']
    #allocation3 [shape = 's32[2]{0}', space=sflag, size = 0x8, scoped, tag = 'scoped memory for tpu_custom_call.1']
    %10 = vsyncpa [#allocation3], 0
    %s11 = scalar_lea.sflag [#allocation3], 1
    %12 = vsyncpa %s11, 0
    loop: start=0, step=1, limit=4
    $region2: #{tpu_custom_call.1} parent=1 // loop_pre_header
      _
    $region3: #{tpu_custom_call.1} parent=1 // loop_header
      %s14 = sphi 0, %s18
      %p15 = scmp.ge.s32.totalorder %s14, 4
      %s21 = sphi 0, %s33
      %s22 = sphi 0, %s29
      %s23 = sphi 0, %s21
      %s24 = sphi 0, %s22
      %s25 = sphi 0, %s23
      %s26 = sphi 0, %s24
      %s36 = sphi 0, %s38
      %s39 = sphi 0, %s36
      %s40 = sphi 0, %s39
      %s56 = sphi 0, %s40
      %s62 = sphi 0, %s64
      %s65 = sphi 0, %s62
      %s66 = sphi 0, %s65
      %s82 = sphi 0, %s66
      %s88 = sphi 0, %s90
      %s91 = sphi 0, %s88
      %s92 = sphi 0, %s91
      %s108 = sphi 0, %s92
      %s112 = sphi 0, %s112
      %s114 = sphi 0, %s112
      %s115 = sphi 0, %s114
      %s129 = sphi 0, %s115
      %s133 = sphi 0, %s133
      %s135 = sphi 0, %s133
      %s136 = sphi 0, %s135
      %s150 = sphi 0, %s136
      %s158 = sphi 0, %s160
      %s161 = sphi 0, %s158
      %s162 = sphi 0, %s161
      %s178 = sphi 0, %s162
    $region4: #{tpu_custom_call.1} parent=1 // loop_header_branch
      %17 = sbr.rel (%p15) target = $region8
    $region5: #{tpu_custom_call.1} parent=1 // loop_body
      %s19 = ssub.s32 %s14, 1
      %s20 = ssub.s32 %s14, 2
      %s27 = sadd.s32 1, %s22
      %p28 = scmp.ge.s32.totalorder %s27, 1
      %s29 = scalar_select %p28, 0, %s27
      %s30 = sadd.s32 1, %s21
      %s31 = scalar_select %p28, %s30, %s21
      %p32 = scmp.ge.s32.totalorder %s31, 2
      %s33 = scalar_select %p32, 0, %s31
      %s34 = ssub.s32 %s21, %s33
      %p35 = scmp.eq.s32.totalorder %s34, 0
      %s37 = sadd.s32 %s36, 1
      %s38 = scalar_select %p35, %s36, %s37
      %p41 = pneg %p35
      %p42 = scmp.eq.s32.totalorder %s14, 1
      %p43 = por %p41, %p42
      %p44 = scmp.ne.s32.totalorder %s36, %s39
      %p45 = scmp.eq.s32.totalorder %s14, 0
      %p46 = por %p44, %p45
      %p47 = scmp.ne.s32.totalorder %s36, %s39
      %p48 = scmp.eq.s32.totalorder %s19, 1
      %p49 = por %p47, %p48
      %p50 = scmp.ne.s32.totalorder %s39, %s40
      %p51 = scmp.eq.s32.totalorder %s19, 0
      %p52 = por %p50, %p51
      %p53 = scmp.ne.s32.totalorder %s39, %s40
      %p54 = scmp.eq.s32.totalorder %s20, 1
      %p55 = por %p53, %p54
      %p57 = scmp.ne.s32.totalorder %s40, %s56
      %p58 = scmp.eq.s32.totalorder %s20, 0
      %p59 = por %p57, %p58
      %s60 = ssub.s32 %s22, %s29
      %p61 = scmp.eq.s32.totalorder %s60, 0
      %s63 = sadd.s32 %s62, 1
      %s64 = scalar_select %p61, %s62, %s63
      %p67 = pneg %p61
      %p68 = scmp.eq.s32.totalorder %s14, 1
      %p69 = por %p67, %p68
      %p70 = scmp.ne.s32.totalorder %s62, %s65
      %p71 = scmp.eq.s32.totalorder %s14, 0
      %p72 = por %p70, %p71
      %p73 = scmp.ne.s32.totalorder %s62, %s65
      %p74 = scmp.eq.s32.totalorder %s19, 1
      %p75 = por %p73, %p74
      %p76 = scmp.ne.s32.totalorder %s65, %s66
      %p77 = scmp.eq.s32.totalorder %s19, 0
      %p78 = por %p76, %p77
      %p79 = scmp.ne.s32.totalorder %s65, %s66
      %p80 = scmp.eq.s32.totalorder %s20, 1
      %p81 = por %p79, %p80
      %p83 = scmp.ne.s32.totalorder %s66, %s82
      %p84 = scmp.eq.s32.totalorder %s20, 0
      %p85 = por %p83, %p84
      %s86 = ssub.s32 %s22, %s29
      %p87 = scmp.eq.s32.totalorder %s86, 0
      %s89 = sadd.s32 %s88, 1
      %s90 = scalar_select %p87, %s88, %s89
      %p93 = pneg %p87
      %p94 = scmp.eq.s32.totalorder %s14, 1
      %p95 = por %p93, %p94
      %p96 = scmp.ne.s32.totalorder %s88, %s91
      %p97 = scmp.eq.s32.totalorder %s14, 0
      %p98 = por %p96, %p97
      %p99 = scmp.ne.s32.totalorder %s88, %s91
      %p100 = scmp.eq.s32.totalorder %s19, 1
      %p101 = por %p99, %p100
      %p102 = scmp.ne.s32.totalorder %s91, %s92
      %p103 = scmp.eq.s32.totalorder %s19, 0
      %p104 = por %p102, %p103
      %p105 = scmp.ne.s32.totalorder %s91, %s92
      %p106 = scmp.eq.s32.totalorder %s20, 1
      %p107 = por %p105, %p106
      %p109 = scmp.ne.s32.totalorder %s92, %s108
      %p110 = scmp.eq.s32.totalorder %s20, 0
      %p111 = por %p109, %p110
      %s113 = sadd.s32 %s112, 1
      %p116 = scmp.eq.s32.totalorder %s14, 1
      %p117 = scmp.ne.s32.totalorder %s112, %s114
      %p118 = scmp.eq.s32.totalorder %s14, 0
      %p119 = por %p117, %p118
      %p120 = scmp.ne.s32.totalorder %s112, %s114
      %p121 = scmp.eq.s32.totalorder %s19, 1
      %p122 = por %p120, %p121
      %p123 = scmp.ne.s32.totalorder %s114, %s115
      %p124 = scmp.eq.s32.totalorder %s19, 0
      %p125 = por %p123, %p124
      %p126 = scmp.ne.s32.totalorder %s114, %s115
      %p127 = scmp.eq.s32.totalorder %s20, 1
      %p128 = por %p126, %p127
      %p130 = scmp.ne.s32.totalorder %s115, %s129
      %p131 = scmp.eq.s32.totalorder %s20, 0
      %p132 = por %p130, %p131
      %s134 = sadd.s32 %s133, 1
      %p137 = scmp.eq.s32.totalorder %s14, 1
      %p138 = scmp.ne.s32.totalorder %s133, %s135
      %p139 = scmp.eq.s32.totalorder %s14, 0
      %p140 = por %p138, %p139
      %p141 = scmp.ne.s32.totalorder %s133, %s135
      %p142 = scmp.eq.s32.totalorder %s19, 1
      %p143 = por %p141, %p142
      %p144 = scmp.ne.s32.totalorder %s135, %s136
      %p145 = scmp.eq.s32.totalorder %s19, 0
      %p146 = por %p144, %p145
      %p147 = scmp.ne.s32.totalorder %s135, %s136
      %p148 = scmp.eq.s32.totalorder %s20, 1
      %p149 = por %p147, %p148
      %p151 = scmp.ne.s32.totalorder %s136, %s150
      %p152 = scmp.eq.s32.totalorder %s20, 0
      %p153 = por %p151, %p152
      %s154 = ssub.s32 %s21, %s33
      %s155 = ssub.s32 %s22, %s29
      %s156 = sor.u32 %s154, %s155
      %p157 = scmp.eq.s32.totalorder %s156, 0
      %s159 = sadd.s32 %s158, 1
      %s160 = scalar_select %p157, %s158, %s159
      %p163 = pneg %p157
      %p164 = scmp.eq.s32.totalorder %s14, 1
      %p165 = por %p163, %p164
      %p166 = scmp.ne.s32.totalorder %s158, %s161
      %p167 = scmp.eq.s32.totalorder %s14, 0
      %p168 = por %p166, %p167
      %p169 = scmp.ne.s32.totalorder %s158, %s161
      %p170 = scmp.eq.s32.totalorder %s19, 1
      %p171 = por %p169, %p170
      %p172 = scmp.ne.s32.totalorder %s161, %s162
      %p173 = scmp.eq.s32.totalorder %s19, 0
      %p174 = por %p172, %p173
      %p175 = scmp.ne.s32.totalorder %s161, %s162
      %p176 = scmp.eq.s32.totalorder %s20, 1
      %p177 = por %p175, %p176
      %p179 = scmp.ne.s32.totalorder %s162, %s178
      %p180 = scmp.eq.s32.totalorder %s20, 0
      %p181 = por %p179, %p180
      %p182 = scmp.le.s32.totalorder 1, %s14
      %p183 = scmp.lt.s32.totalorder %s14, 3
      %p184 = pnand %p182, %p183
      %p185 = pneg %p184
      // Predicated region
      $region9: #{tpu_custom_call.1} parent=5 // pred_check
        _
      $region10: #{tpu_custom_call.1} parent=5 // pred_check_branch
        %187 = sbr.rel (%p184) target = $region12
      $region11: #{tpu_custom_call.1} parent=5 // pred_region
        %s188 = ssub.s32 %s14, 1
        // Predicated region
        $region13: #{tpu_custom_call.1} parent=11 // pred_check
          %p189 = pneg %p78
        $region14: #{tpu_custom_call.1} parent=11 // pred_check_branch
          %191 = sbr.rel (%p189) target = $region16
        $region15: #{tpu_custom_call.1} parent=11 // pred_region
          %p192 = scmp.lt.s32.totalorder %s24, 0
          %s193 = scalar_select %p192, %s24, 0
          %s194 = smul.addr %s193, 4
          %s195 = scalar_lea.vmem %s1, %s194
        $region16: #{tpu_custom_call.1} parent=11 // pred_fallthru
          _
        // Predicated region
        $region17: #{tpu_custom_call.1} parent=11 // pred_check
          %p196 = pneg %p104
        $region18: #{tpu_custom_call.1} parent=11 // pred_check_branch
          %198 = sbr.rel (%p196) target = $region20
        $region19: #{tpu_custom_call.1} parent=11 // pred_region
          %p199 = scmp.lt.s32.totalorder %s24, 0
          %s200 = scalar_select %p199, %s24, 0
          %s201 = scalar_lea.vmem %s2, %s200
        $region20: #{tpu_custom_call.1} parent=11 // pred_fallthru
          _
        // Predicated region
        $region21: #{tpu_custom_call.1} parent=11 // pred_check
          %p202 = pneg %p125
        $region22: #{tpu_custom_call.1} parent=11 // pred_check_branch
          %204 = sbr.rel (%p202) target = $region24
        $region23: #{tpu_custom_call.1} parent=11 // pred_region
          _
        $region24: #{tpu_custom_call.1} parent=11 // pred_fallthru
          _
        // Predicated region
        $region25: #{tpu_custom_call.1} parent=11 // pred_check
          %p205 = pneg %p146
        $region26: #{tpu_custom_call.1} parent=11 // pred_check_branch
          %207 = sbr.rel (%p205) target = $region28
        $region27: #{tpu_custom_call.1} parent=11 // pred_region
          _
        $region28: #{tpu_custom_call.1} parent=11 // pred_fallthru
          _
      $region12: #{tpu_custom_call.1} parent=5 // pred_fallthru
        _
      %p208 = scmp.lt.s32.totalorder %s14, 2
      // Predicated region
      $region29: #{tpu_custom_call.1} parent=5 // pred_check
        %p209 = pneg %p208
      $region30: #{tpu_custom_call.1} parent=5 // pred_check_branch
        %211 = sbr.rel (%p209) target = $region32
      $region31: #{tpu_custom_call.1} parent=5 // pred_region
        // Predicated region
        $region33: #{tpu_custom_call.1} parent=31 // pred_check
          %p212 = pneg %p46
        $region34: #{tpu_custom_call.1} parent=31 // pred_check_branch
          %214 = sbr.rel (%p212) target = $region36
        $region35: #{tpu_custom_call.1} parent=31 // pred_region
          %s215 = smul.u32 2, %s21
          %p216 = scmp.lt.s32.totalorder %s215, 3
          %s217 = scalar_select %p216, %s215, 3
          %s218 = smul.addr %s217, 4
          %s219 = scalar_lea.vmem %s0, %s218
          %s220 = smul.u32 2, %s21
        $region36: #{tpu_custom_call.1} parent=31 // pred_fallthru
          _
      $region32: #{tpu_custom_call.1} parent=5 // pred_fallthru
        _
      %p221 = scmp.le.s32.totalorder 1, %s14
      %p222 = scmp.lt.s32.totalorder %s14, 3
      %p223 = pnand %p221, %p222
      %p224 = pneg %p223
      // Predicated region
      $region37: #{tpu_custom_call.1} parent=5 // pred_check
        _
      $region38: #{tpu_custom_call.1} parent=5 // pred_check_branch
        %226 = sbr.rel (%p223) target = $region40
      $region39: #{tpu_custom_call.1} parent=5 // pred_region
        %s227 = ssub.s32 %s14, 1
        %s228 = smul.u32 2, %s23
        %p229 = scmp.lt.s32.totalorder %s228, 3
        %s230 = scalar_select %p229, %s228, 3
        %s231 = smul.addr %s230, 4
        %s232 = scalar_lea.vmem %s0, %s231
        %p233 = pneg %p52
        %p234 = pneg %p49
        %p235 = scmp.lt.s32.totalorder %s24, 0
        %s236 = scalar_select %p235, %s24, 0
        %s237 = smul.addr %s236, 4
        %s238 = scalar_lea.vmem %s1, %s237
        %p239 = pneg %p78
        %p240 = pneg %p75
        %p241 = scmp.lt.s32.totalorder %s24, 0
        %s242 = scalar_select %p241, %s24, 0
        %s243 = scalar_lea.vmem %s2, %s242
        %p244 = pneg %p104
        %p245 = pneg %p101
        %p246 = pneg %p125
        %p247 = pneg %p122
        %p248 = pneg %p146
        %p249 = pneg %p143
        %p250 = pneg %p174
        %p251 = pneg %p171
        %s252 = sand.u32 %s161, 1
        %s253 = scalar_lea.sflag [#allocation3], %s252
        %s254 = sand.u32 %s161, 1
        %s255 = smul.addr %s254, 8
        %s256 = scalar_lea.vmem [#allocation2], %s255
        %s257 = smul.u32 2, %s23
        %p258 = scmp.lt.s32.totalorder %s257, 3
        %s259 = scalar_select %p258, %s257, 3
        %s260 = smul.addr %s259, 4
        %s261 = scalar_lea.vmem %s0, %s260
        %s262 = smul.u32 2, %s23
        %p263 = scmp.lt.s32.totalorder %s24, 0
        %s264 = scalar_select %p263, %s24, 0
        %s265 = smul.addr %s264, 4
        %s266 = scalar_lea.vmem %s1, %s265
        %p267 = scmp.lt.s32.totalorder %s24, 0
        %s268 = scalar_select %p267, %s24, 0
        %s269 = scalar_lea.vmem %s2, %s268
        %s270 = smul.u32 2, %s23
        %v272 = vld [vmem:[%s261] sm:$0xf]
        %v273 = vld [vmem:[%s261 + $0x4] sm:$0xf]
        %v274 = vld [vmem:[%s266] sm:$0xf]
        %v275 = vld [vmem:[%s266 + $0x4] sm:$0xf]
        %v276 = vld [vmem:[%s266 + $0x8] sm:$0xf]
        %v277 = vld [vmem:[%s266 + $0xc] sm:$0xf]
        %v278 = vld [vmem:[%s269] sm:$0x1]
        %v280 = vlaneseq
        %v281 = vshrl.u32 %v280, 7
        %v282 = vsub.s32 0, %v281
        %v283 = vrot.slane %v278, %v282
        %v287 = vunpack.c.l.b16 %v272
        %v288 = vunpack.c.l.b16 %v273
        %v289 = vpack.c.b16 %v288, %v287
        %v294 = vunpack.c.l.b16 %v274
        %v295 = vunpack.c.l.b16 %v275
        %v296 = vunpack.c.l.b16 %v276
        %v297 = vunpack.c.l.b16 %v277
        %v298 = vpack.c.b16 %v295, %v294
        %v299 = vpack.c.b16 %v297, %v296
        %vm302 = vcmask 261120
        %v304 = vsel %vm302, %v289, 0
        %306 = vmatprep.subr.bf16.mxu0 0
        %307 = vmatpush1.bf16.msra.mxu0 %v298
        %308 = vmatprep.subr.bf16.mxu0 0
        %309 = vmatpush1.bf16.msra.mxu0 %v299
        %310 = vmatprep.subr.bf16.mxu0 0
        %311 = vmatpush1.bf16.msra.mxu0 0
        %312 = vmatprep.subr.bf16.mxu0 0
        %313 = vmatpush1.bf16.msra.mxu0 0
        %314 = vmatprep.subr.bf16.mxu0 0
        %315 = vmatpush1.bf16.msra.mxu0 0
        %316 = vmatprep.subr.bf16.mxu0 0
        %317 = vmatpush1.bf16.msra.mxu0 0
        %318 = vmatprep.subr.bf16.mxu0 0
        %319 = vmatpush1.bf16.msra.mxu0 0
        %320 = vmatprep.subr.bf16.mxu0 0
        %321 = vmatpush1.bf16.msra.mxu0 0
        %322 = vmatprep.subr.bf16.mxu0 0
        %323 = vmatpush1.bf16.msra.mxu0 0
        %324 = vmatprep.subr.bf16.mxu0 0
        %325 = vmatpush1.bf16.msra.mxu0 0
        %326 = vmatprep.subr.bf16.mxu0 0
        %327 = vmatpush1.bf16.msra.mxu0 0
        %328 = vmatprep.subr.bf16.mxu0 0
        %329 = vmatpush1.bf16.msra.mxu0 0
        %330 = vmatprep.subr.bf16.mxu0 0
        %331 = vmatpush1.bf16.msra.mxu0 0
        %332 = vmatprep.subr.bf16.mxu0 0
        %333 = vmatpush1.bf16.msra.mxu0 0
        %334 = vmatprep.subr.bf16.mxu0 0
        %335 = vmatpush1.bf16.msra.mxu0 0
        %336 = vmatprep.subr.bf16.mxu0 0
        %337 = vmatpush1.bf16.msra.mxu0 0
        %338 = vmatprep.mubr.bf16.mxu0 0
        %339 = vmatmul.mubr.bf16.gmra.mrb[0].mxu0 %v304
        %v340 = vpop.f32.mrb[0].mxu0
        %v341 = vadd.f32 %v283, %v340
        %v342 = vpop.f32.mrb[0].mxu0
        %v343 = vpop.f32.mrb[0].mxu0
        %v344 = vadd.f32 %v283, %v343
        %v345 = vpop.f32.mrb[0].mxu0
        %346 = vdwg.mxu0
        %v347 = vxor.u32 %v341, 2147483648
        %v348 = vxor.u32 %v344, 2147483648
        %v349 = vmul.f32 %v347, 1.442695
        %v350 = vpow.pop %v349
        %v351 = vmul.f32 %v348, 1.442695
        %v352 = vpow.pop %v351
        %v353 = vadd.f32 %v350, 1.0
        %v354 = vadd.f32 %v352, 1.0
        %v355 = vrcp.pop %v353
        %v356 = vmul.f32 1.0, %v355
        %v357 = vrcp.pop %v354
        %v358 = vmul.f32 1.0, %v357
        %v359 = vmul.f32 %v356, %v356
        %v360 = vmul.f32 %v358, %v358
        %v361 = vpack.c.bf16 %v360, %v359
        %v362 = vld [vmem:[%s3] sm:$0xf]
        %v363 = vld [vmem:[%s3 + $0x4] sm:$0xf]
        %v364 = vld [vmem:[%s3 + $0x8] sm:$0xf]
        %v365 = vld [vmem:[%s3 + $0xc] sm:$0xf]
        %v366 = vld [vmem:[%s3 + $0x10] sm:$0xf]
        %v367 = vld [vmem:[%s3 + $0x14] sm:$0xf]
        %v368 = vld [vmem:[%s3 + $0x18] sm:$0xf]
        %v369 = vld [vmem:[%s3 + $0x1c] sm:$0xf]
        %v370 = vld [vmem:[%s3 + $0x20] sm:$0xf]
        %v371 = vld [vmem:[%s3 + $0x24] sm:$0xf]
        %v372 = vld [vmem:[%s3 + $0x28] sm:$0xf]
        %v373 = vld [vmem:[%s3 + $0x2c] sm:$0xf]
        %v374 = vld [vmem:[%s3 + $0x30] sm:$0xf]
        %v375 = vld [vmem:[%s3 + $0x34] sm:$0xf]
        %v376 = vld [vmem:[%s3 + $0x38] sm:$0xf]
        %v377 = vld [vmem:[%s3 + $0x3c] sm:$0xf]
        %v394 = vunpack.c.l.b16 %v362
        %v395 = vunpack.c.l.b16 %v363
        %v396 = vunpack.c.l.b16 %v364
        %v397 = vunpack.c.l.b16 %v365
        %v398 = vunpack.c.l.b16 %v366
        %v399 = vunpack.c.l.b16 %v367
        %v400 = vunpack.c.l.b16 %v368
        %v401 = vunpack.c.l.b16 %v369
        %v402 = vunpack.c.l.b16 %v370
        %v403 = vunpack.c.l.b16 %v371
        %v404 = vunpack.c.l.b16 %v372
        %v405 = vunpack.c.l.b16 %v373
        %v406 = vunpack.c.l.b16 %v374
        %v407 = vunpack.c.l.b16 %v375
        %v408 = vunpack.c.l.b16 %v376
        %v409 = vunpack.c.l.b16 %v377
        %v410 = vpack.c.b16 %v395, %v394
        %v411 = vpack.c.b16 %v397, %v396
        %v412 = vpack.c.b16 %v399, %v398
        %v413 = vpack.c.b16 %v401, %v400
        %v414 = vpack.c.b16 %v403, %v402
        %v415 = vpack.c.b16 %v405, %v404
        %v416 = vpack.c.b16 %v407, %v406
        %v417 = vpack.c.b16 %v409, %v408
        %426 = vmatprep.subr.bf16.mxu0 0
        %427 = vmatpush1.bf16.msra.mxu0 %v410
        %428 = vmatprep.subr.bf16.mxu0 0
        %429 = vmatpush1.bf16.msra.mxu0 %v411
        %430 = vmatprep.subr.bf16.mxu0 0
        %431 = vmatpush1.bf16.msra.mxu0 %v412
        %432 = vmatprep.subr.bf16.mxu0 0
        %433 = vmatpush1.bf16.msra.mxu0 %v413
        %434 = vmatprep.subr.bf16.mxu0 0
        %435 = vmatpush1.bf16.msra.mxu0 %v414
        %436 = vmatprep.subr.bf16.mxu0 0
        %437 = vmatpush1.bf16.msra.mxu0 %v415
        %438 = vmatprep.subr.bf16.mxu0 0
        %439 = vmatpush1.bf16.msra.mxu0 %v416
        %440 = vmatprep.subr.bf16.mxu0 0
        %441 = vmatpush1.bf16.msra.mxu0 %v417
        %442 = vmatprep.subr.bf16.mxu0 0
        %443 = vmatpush1.bf16.msra.mxu0 0
        %444 = vmatprep.subr.bf16.mxu0 0
        %445 = vmatpush1.bf16.msra.mxu0 0
        %446 = vmatprep.subr.bf16.mxu0 0
        %447 = vmatpush1.bf16.msra.mxu0 0
        %448 = vmatprep.subr.bf16.mxu0 0
        %449 = vmatpush1.bf16.msra.mxu0 0
        %450 = vmatprep.subr.bf16.mxu0 0
        %451 = vmatpush1.bf16.msra.mxu0 0
        %452 = vmatprep.subr.bf16.mxu0 0
        %453 = vmatpush1.bf16.msra.mxu0 0
        %454 = vmatprep.subr.bf16.mxu0 0
        %455 = vmatpush1.bf16.msra.mxu0 0
        %456 = vmatprep.subr.bf16.mxu0 0
        %457 = vmatpush1.bf16.msra.mxu0 0
        %458 = vmatprep.mubr.bf16.mxu0 0
        %459 = vmatmul.mubr.bf16.gmra.mrb[0].mxu0 %v361
        %v460 = vpop.f32.mrb[0].mxu0
        %v461 = vadd.f32 0.0, %v460
        %v462 = vpop.f32.mrb[0].mxu0
        %v463 = vpop.f32.mrb[0].mxu0
        %v464 = vadd.f32 0.0, %v463
        %v465 = vpop.f32.mrb[0].mxu0
        %466 = vdwg.mxu0
        %v467 = vmax.f32 %v461, 1e-24
        %v468 = vmax.f32 %v464, 1e-24
        %v469 = vrsqrt.pop %v467
        %v470 = vrsqrt.pop %v468
        %v471 = vld [vmem:[%s4] sm:$0xff]
        %v472 = vld [vmem:[%s4 + $0x8] sm:$0xff]
        %vm473 = vcmask 130048
        %v475 = vsel %vm473, %v469, 0
        %v478 = vsel %vm473, %v470, 0
        %480 = vmatprep.subr.mxu0 0.0
        %481 = vmatpush1.msra.mxu0 %v471
        %482 = vmatprep.subr.mxu0 0.0
        %483 = vmatpush1.msra.mxu0 %v472
        %484 = vmatprep.subr.mxu0 0.0
        %485 = vmatpush1.msra.mxu0 0.0
        %486 = vmatprep.subr.mxu0 0.0
        %487 = vmatpush1.msra.mxu0 0.0
        %488 = vmatprep.subr.mxu0 0.0
        %489 = vmatpush1.msra.mxu0 0.0
        %490 = vmatprep.subr.mxu0 0.0
        %491 = vmatpush1.msra.mxu0 0.0
        %492 = vmatprep.subr.mxu0 0.0
        %493 = vmatpush1.msra.mxu0 0.0
        %494 = vmatprep.subr.mxu0 0.0
        %495 = vmatpush1.msra.mxu0 0.0
        %496 = vmatprep.subr.mxu0 0.0
        %497 = vmatpush1.msra.mxu0 0.0
        %498 = vmatprep.subr.mxu0 0.0
        %499 = vmatpush1.msra.mxu0 0.0
        %500 = vmatprep.subr.mxu0 0.0
        %501 = vmatpush1.msra.mxu0 0.0
        %502 = vmatprep.subr.mxu0 0.0
        %503 = vmatpush1.msra.mxu0 0.0
        %504 = vmatprep.subr.mxu0 0.0
        %505 = vmatpush1.msra.mxu0 0.0
        %506 = vmatprep.subr.mxu0 0.0
        %507 = vmatpush1.msra.mxu0 0.0
        %508 = vmatprep.subr.mxu0 0.0
        %509 = vmatpush1.msra.mxu0 0.0
        %510 = vmatprep.subr.mxu0 0.0
        %511 = vmatpush1.msra.mxu0 0.0
        %512 = vmatprep.subr.mxu0 0.0
        %513 = vmatpush1.msra.mxu0 0.0
        %514 = vmatprep.subr.mxu0 0.0
        %515 = vmatpush1.msra.mxu0 0.0
        %516 = vmatprep.subr.mxu0 0.0
        %517 = vmatpush1.msra.mxu0 0.0
        %518 = vmatprep.subr.mxu0 0.0
        %519 = vmatpush1.msra.mxu0 0.0
        %520 = vmatprep.subr.mxu0 0.0
        %521 = vmatpush1.msra.mxu0 0.0
        %522 = vmatprep.subr.mxu0 0.0
        %523 = vmatpush1.msra.mxu0 0.0
        %524 = vmatprep.subr.mxu0 0.0
        %525 = vmatpush1.msra.mxu0 0.0
        %526 = vmatprep.subr.mxu0 0.0
        %527 = vmatpush1.msra.mxu0 0.0
        %528 = vmatprep.subr.mxu0 0.0
        %529 = vmatpush1.msra.mxu0 0.0
        %530 = vmatprep.subr.mxu0 0.0
        %531 = vmatpush1.msra.mxu0 0.0
        %532 = vmatprep.subr.mxu0 0.0
        %533 = vmatpush1.msra.mxu0 0.0
        %534 = vmatprep.subr.mxu0 0.0
        %535 = vmatpush1.msra.mxu0 0.0
        %536 = vmatprep.subr.mxu0 0.0
        %537 = vmatpush1.msra.mxu0 0.0
        %538 = vmatprep.subr.mxu0 0.0
        %539 = vmatpush1.msra.mxu0 0.0
        %540 = vmatprep.subr.mxu0 0.0
        %541 = vmatpush1.msra.mxu0 0.0
        %542 = vmatprep.subr.mxu0 0.0
        %543 = vmatpush1.msra.mxu0 0.0
        %544 = vmatprep.mubr.f32.mxu0 0.0
        %545 = vmatmul.mubr.f32.gmra.mrb[0].mxu0 %v475
        %v546 = vpop.f32.mrb[0].mxu0
        %v547 = vadd.f32 0.0, %v546
        %v548 = vpop.f32.mrb[0].mxu0
        %549 = vmatprep.mubr.f32.mxu0 0.0
        %550 = vmatmul.mubr.f32.gmra.mrb[0].mxu0 %v478
        %v551 = vpop.f32.mrb[0].mxu0
        %v552 = vadd.f32 0.0, %v551
        %v553 = vpop.f32.mrb[0].mxu0
        %554 = vdwg.mxu0
        %v555 = vmul.f32 %v356, %v547
        %v556 = vmul.f32 %v358, %v552
        %v557 = vpack.c.bf16 %v556, %v555
        %v559 = vunpack.c.l.b16 %v557
        %v560 = vunpack.c.h.b16 %v557
        %v561 = vpack.c.b16 %v559, %v559
        %v562 = vpack.c.b16 %v560, %v560
        %565 = vst [vmem:[%s256] sm:$0xf] %v561
        %566 = vst [vmem:[%s256 + $0x4] sm:$0xf] %v562
        %s567 = sand.u32 %s161, 1
        %s568 = scalar_lea.sflag [#allocation3], %s567
        %s569 = sand.u32 %s161, 1
        %s570 = smul.addr %s569, 8
        %s571 = scalar_lea.vmem [#allocation2], %s570
        // Predicated region
        $region41: #{tpu_custom_call.1} parent=39 // pred_check
          %p572 = pneg %p171
        $region42: #{tpu_custom_call.1} parent=39 // pred_check_branch
          %574 = sbr.rel (%p572) target = $region44
        $region43: #{tpu_custom_call.1} parent=39 // pred_region
          %s575 = smul.u32 2, %s23
          %s577 = ssub.s32 128, 128
          %578 = vsyncadd %s568, %s577
          %s579 = sadd.s32 %s24, %s575
          %s580 = smul.addr %s579, 64
          %s581 = scalar_lea.hbm %s5, %s580
          %s582 = sshll.u32 %s571, 4
          %s583 = int_to_ptr.vmem [resolvable:$true] %s582
          %588 = dma.vmem_to_hbm [thread:$0]  %s583, 128, %s581, %s568, 64, 64, 4
        $region44: #{tpu_custom_call.1} parent=39 // pred_fallthru
          _
      $region40: #{tpu_custom_call.1} parent=5 // pred_fallthru
        _
      %p589 = scmp.le.s32.totalorder 2, %s14
      // Predicated region
      $region45: #{tpu_custom_call.1} parent=5 // pred_check
        %p590 = pneg %p589
      $region46: #{tpu_custom_call.1} parent=5 // pred_check_branch
        %592 = sbr.rel (%p590) target = $region48
      $region47: #{tpu_custom_call.1} parent=5 // pred_region
        %s593 = ssub.s32 %s14, 2
        // Predicated region
        $region49: #{tpu_custom_call.1} parent=47 // pred_check
          %p594 = pneg %p177
        $region50: #{tpu_custom_call.1} parent=47 // pred_check_branch
          %596 = sbr.rel (%p594) target = $region52
        $region51: #{tpu_custom_call.1} parent=47 // pred_region
          %s597 = sand.u32 %s162, 1
          %s598 = scalar_lea.sflag [#allocation3], %s597
          %s599 = sand.u32 %s162, 1
          %s600 = smul.addr %s599, 8
          %s601 = scalar_lea.vmem [#allocation2], %s600
          %602 = dma.done %s598, 128
        $region52: #{tpu_custom_call.1} parent=47 // pred_fallthru
          _
      $region48: #{tpu_custom_call.1} parent=5 // pred_fallthru
        _
    $region6: #{tpu_custom_call.1} parent=1 // loop_footer
      %s18 = sadd.s32 1, %s14
    $region7: #{tpu_custom_call.1} parent=1 // loop_footer_branch
      %13 = sbr.rel target = $region3
    $region8: #{tpu_custom_call.1} parent=1 // loop_exit
      _
    %603 = vsyncpa [#allocation3], 1
    %s604 = scalar_lea.sflag [#allocation3], 1
    %605 = vsyncpa %s604, 1

</llo_original>
